<compile_context>
chip_gen: v5e
topology: v5e:2x2
jax: 0.10.0
libtpu: 0.0.40
codegen_flags: <defaults>
</compile_context>

<pallas_src>
import functools

import jax
import jax.numpy as jnp
from jax.experimental import pallas as pl
from jax.experimental.pallas import tpu as pltpu


def eca_kernel(w_ref, x_ref, o_ref, pbuf_ref, *, inv_hw):
    # w_ref:    (3,) conv1d weights in SMEM
    # x_ref:    (bt, C, HWp) block of the (zero-padded) flattened input
    # o_ref:    (bt, C, HWp)
    # pbuf_ref: (bt, C + 2, 1) fp32 VMEM scratch (zero-padded pooled vector)
    bt, C, _ = x_ref.shape

    x = x_ref[...]                                      # stays in input dtype

    # Global average pool over the flattened spatial (lane) axis, fp32 accumulate.
    # inv_hw uses the REAL H*W, so lane zero-padding does not change the mean.
    pooled = jnp.sum(x, axis=-1, keepdims=True, dtype=jnp.float32) * inv_hw  # (bt,C,1)

    # k=3 channel conv with zero padding via the (bt, C+2, 1) scratch:
    # write the two padding rows (cheap) and the pooled vector, read shifted taps.
    zeros_edge = jnp.zeros((bt, 1, 1), jnp.float32)
    pbuf_ref[:, 0:1, :] = zeros_edge
    pbuf_ref[:, C + 1:C + 2, :] = zeros_edge
    pbuf_ref[:, 1:C + 1, :] = pooled

    p_prev = pbuf_ref[:, 0:C, :]                        # pooled[i-1], 0 at i = 0
    p_next = pbuf_ref[:, 2:C + 2, :]                    # pooled[i+1], 0 at i = C-1
    y = w_ref[0] * p_prev + w_ref[1] * pooled + w_ref[2] * p_next   # (bt, C, 1) f32

    # Sigmoid gate (EUP) on the tiny vector, then one broadcast multiply over x
    # in the input dtype (no fp32 copy of the full block).
    scale = jax.nn.sigmoid(y)                           # (bt, C, 1) f32
    o_ref[...] = x * scale.astype(o_ref.dtype)


def _vmem_limit_bytes():
    """~75% of physical VMEM: ~96 MiB on v5e/v6e (128 MiB), ~48 MiB on v7x (64 MiB)."""
    cap = 64 * 1024 * 1024                 # conservative default if the query fails
    try:
        info = pltpu.get_tpu_info()
        cap = int(getattr(info, "vmem_capacity_bytes", cap))
    except Exception:
        pass
    return int(min(max(cap * 3 // 4, 32 * 1024 * 1024), 100 * 1024 * 1024))


def _pick_batch_tile(batch, c, hw, itemsize, vmem_budget):
    """Largest divisor of `batch` whose double-buffered in+out blocks (~4x block
    bytes) fit the budget, capped at batch//2 so the grid has >= 2 steps."""
    per_image = max(1, 4 * c * hw * itemsize)
    limit = max(1, vmem_budget // per_image)
    cap = max(1, batch // 2)               # >= 2 grid steps (pipelining / dual-TC)
    bt = int(min(batch, cap, limit))
    while batch % bt:
        bt -= 1
    return max(bt, 1)


def eca_forward(x, conv_w):
    """x: (B, C, H, W).  conv_w: (3,) Conv1d(1,1,k=3,bias=False) weights."""
    B, C, H, W = x.shape
    assert conv_w.shape == (3,), "only k_size=3 is implemented"
    HW = H * W
    HWp = ((HW + 127) // 128) * 128        # lane-dense writeback
    itemsize = jnp.dtype(x.dtype).itemsize

    x2 = x.reshape(B, C, HW)
    if HWp != HW:
        x2 = jnp.pad(x2, ((0, 0), (0, 0), (0, HWp - HW)))

    vmem_limit = _vmem_limit_bytes()
    bt = _pick_batch_tile(B, C, HWp, itemsize, int(vmem_limit * 0.85))

    # TODO(synk): for feature maps so large that even bt=1 overflows the VMEM
    # budget (e.g. 64x224x224 f32), split into a pooled/conv/sigmoid pass tiled
    # over HW plus an HW-tiled broadcast-multiply pass.
    assert 4 * C * HWp * itemsize <= vmem_limit, (
        "single image exceeds the VMEM budget; HW-tiled fallback not implemented")

    cost = pl.CostEstimate(
        flops=int(4 * B * C * HW),
        transcendentals=int(B * C),
        bytes_accessed=int(2 * B * C * HW * itemsize),
    )

    out2 = pl.pallas_call(
        functools.partial(eca_kernel, inv_hw=1.0 / float(HW)),
        out_shape=jax.ShapeDtypeStruct((B, C, HWp), x.dtype),
        grid_spec=pltpu.PrefetchScalarGridSpec(
            num_scalar_prefetch=0,
            grid=(B // bt,),
            in_specs=[
                pl.BlockSpec(memory_space=pltpu.MemorySpace.SMEM),     # conv_w (3,)
                pl.BlockSpec((bt, C, HWp), lambda b: (b, 0, 0)),
            ],
            out_specs=pl.BlockSpec((bt, C, HWp), lambda b: (b, 0, 0)),
            scratch_shapes=[pltpu.VMEM((bt, C + 2, 1), jnp.float32)],
        ),
        compiler_params=pltpu.CompilerParams(
            dimension_semantics=("parallel",),
            vmem_limit_bytes=vmem_limit,
        ),
        cost_estimate=cost,
    )(conv_w.astype(jnp.float32), x2)

    if HWp != HW:
        out2 = out2[:, :, :HW]
    return out2.reshape(B, C, H, W)


def eca_reference(x, conv_w):
    """Pure-JAX reference matching the PyTorch forward exactly."""
    B, C, H, W = x.shape
    pooled = jnp.mean(x, axis=(2, 3))                      # (B, C)
    padded = jnp.pad(pooled, ((0, 0), (1, 1)))             # (B, C+2)
    y = (
        conv_w[0] * padded[:, 0:C]
        + conv_w[1] * padded[:, 1:C + 1]
        + conv_w[2] * padded[:, 2:C + 2]
    )                                                      # (B, C)
    scale = jax.nn.sigmoid(y)[:, :, None, None]            # (B, C, 1, 1)
    return x * scale


if __name__ == "__main__":
    key = jax.random.PRNGKey(0)
    kx, kw = jax.random.split(key)

    B, C, H, W = 2, 4, 16, 16
    x = jax.random.normal(kx, (B, C, H, W), dtype=jnp.float32)

    # Conv1d(1, 1, kernel_size=3, bias=False) weight, shape (1, 1, 3) in torch;
    # deterministic kaiming-uniform-style init: U(-1/sqrt(3), 1/sqrt(3)).
    bound = 1.0 / jnp.sqrt(3.0)
    conv_w = jax.random.uniform(kw, (3,), dtype=jnp.float32, minval=-bound, maxval=bound)

    out = eca_forward(x, conv_w)
    out = jax.block_until_ready(out)

    ref = eca_reference(x, conv_w)
    assert out.shape == (B, C, H, W)
    assert jnp.allclose(out, ref, atol=1e-5, rtol=1e-5), "mismatch vs reference"

    print("KERNEL_OK")
</pallas_src>

<mosaic_0001>
module attributes {stable_mosaic.version = 11 : i64} {
  func.func @eca_kernel(%arg0: i32, %arg1: memref<3xf32, #tpu.memory_space<smem>>, %arg2: memref<1x4x256xf32, #tpu.memory_space<vmem>>, %arg3: memref<1x4x256xf32, #tpu.memory_space<vmem>>, %arg4: memref<1x6x1xf32, #tpu.memory_space<vmem>>) attributes {dimension_semantics = [#tpu.dimension_semantics<parallel>], iteration_bounds = array<i64: 2>, scalar_prefetch = 0 : i64, scratch_operands = 1 : i64, tpu.core_type = #tpu.core_type<tc>, window_params = [{transform_indices = @transform_0, window_bounds = array<i64: 3>}, {transform_indices = @transform_1, window_bounds = array<i64: 1, 4, 256>}, {transform_indices = @transform_2, window_bounds = array<i64: 1, 4, 256>}]} {
    %c0 = arith.constant 0 : index
    %c0_0 = arith.constant 0 : index
    %c0_1 = arith.constant 0 : index
    %0 = vector.load %arg2[%c0, %c0_0, %c0_1] : memref<1x4x256xf32, #tpu.memory_space<vmem>>, vector<1x4x256xf32>
    %cst = arith.constant dense<0.000000e+00> : vector<1x4xf32>
    %1 = vector.multi_reduction <add>, %0, %cst [2] : vector<1x4x256xf32> to vector<1x4xf32>
    %2 = vector.shape_cast %1 : vector<1x4xf32> to vector<1x4x1xf32>
    %cst_2 = arith.constant 3.906250e-03 : f32
    %3 = vector.broadcast %cst_2 : f32 to vector<1x4x1xf32>
    %4 = arith.mulf %2, %3 : vector<1x4x1xf32>
    %cst_3 = arith.constant 0.000000e+00 : f32
    %5 = vector.broadcast %cst_3 : f32 to vector<1x1x1xf32>
    %c0_4 = arith.constant 0 : index
    %c0_5 = arith.constant 0 : index
    %c0_6 = arith.constant 0 : index
    %6 = vector.load %arg4[%c0_4, %c0_5, %c0_6] : memref<1x6x1xf32, #tpu.memory_space<vmem>>, vector<1x1x1xf32>
    tpu.vector_store %arg4[%c0_4, %c0_5, %c0_6], %5 {strides = array<i32>} : memref<1x6x1xf32, #tpu.memory_space<vmem>>, vector<1x1x1xf32>,
    %c0_7 = arith.constant 0 : index
    %c5 = arith.constant 5 : index
    %c0_8 = arith.constant 0 : index
    %7 = vector.load %arg4[%c0_7, %c5, %c0_8] : memref<1x6x1xf32, #tpu.memory_space<vmem>>, vector<1x1x1xf32>
    tpu.vector_store %arg4[%c0_7, %c5, %c0_8], %5 {strides = array<i32>} : memref<1x6x1xf32, #tpu.memory_space<vmem>>, vector<1x1x1xf32>,
    %c0_9 = arith.constant 0 : index
    %c1 = arith.constant 1 : index
    %c0_10 = arith.constant 0 : index
    %8 = vector.load %arg4[%c0_9, %c1, %c0_10] : memref<1x6x1xf32, #tpu.memory_space<vmem>>, vector<1x4x1xf32>
    tpu.vector_store %arg4[%c0_9, %c1, %c0_10], %4 {strides = array<i32>} : memref<1x6x1xf32, #tpu.memory_space<vmem>>, vector<1x4x1xf32>,
    %c0_11 = arith.constant 0 : index
    %c0_12 = arith.constant 0 : index
    %c0_13 = arith.constant 0 : index
    %9 = vector.load %arg4[%c0_11, %c0_12, %c0_13] : memref<1x6x1xf32, #tpu.memory_space<vmem>>, vector<1x4x1xf32>
    %c0_14 = arith.constant 0 : index
    %c2 = arith.constant 2 : index
    %c0_15 = arith.constant 0 : index
    %10 = vector.load %arg4[%c0_14, %c2, %c0_15] : memref<1x6x1xf32, #tpu.memory_space<vmem>>, vector<1x4x1xf32>
    %c0_16 = arith.constant 0 : index
    %11 = memref.load %arg1[%c0_16] : memref<3xf32, #tpu.memory_space<smem>>
    %12 = vector.broadcast %11 : f32 to vector<1x4x1xf32>
    %13 = arith.mulf %12, %9 : vector<1x4x1xf32>
    %c1_17 = arith.constant 1 : index
    %14 = memref.load %arg1[%c1_17] : memref<3xf32, #tpu.memory_space<smem>>
    %15 = vector.broadcast %14 : f32 to vector<1x4x1xf32>
    %16 = arith.mulf %15, %4 : vector<1x4x1xf32>
    %17 = arith.addf %13, %16 : vector<1x4x1xf32>
    %c2_18 = arith.constant 2 : index
    %18 = memref.load %arg1[%c2_18] : memref<3xf32, #tpu.memory_space<smem>>
    %19 = vector.broadcast %18 : f32 to vector<1x4x1xf32>
    %20 = arith.mulf %19, %10 : vector<1x4x1xf32>
    %21 = arith.addf %17, %20 : vector<1x4x1xf32>
    %22 = arith.negf %21 : vector<1x4x1xf32>
    %23 = math.exp %22 : vector<1x4x1xf32>
    %cst_19 = arith.constant 1.000000e+00 : f32
    %24 = vector.broadcast %cst_19 : f32 to vector<1x4x1xf32>
    %25 = arith.addf %24, %23 : vector<1x4x1xf32>
    %26 = arith.divf %24, %25 : vector<1x4x1xf32>
    %27 = vector.broadcast %26 : vector<1x4x1xf32> to vector<1x4x256xf32>
    %28 = arith.mulf %0, %27 : vector<1x4x256xf32>
    %c0_20 = arith.constant 0 : index
    %c0_21 = arith.constant 0 : index
    %c0_22 = arith.constant 0 : index
    %29 = vector.load %arg3[%c0_20, %c0_21, %c0_22] : memref<1x4x256xf32, #tpu.memory_space<vmem>>, vector<1x4x256xf32>
    tpu.vector_store %arg3[%c0_20, %c0_21, %c0_22], %28 {strides = array<i32>} : memref<1x4x256xf32, #tpu.memory_space<vmem>>, vector<1x4x256xf32>,
    return
  }
  func.func @transform_0(%arg0: i32) -> i32 {
    %c0_i32 = arith.constant 0 : i32
    %c0_i32_0 = arith.constant 0 : i32
    return %c0_i32 : i32
  }
  func.func @transform_1(%arg0: i32) -> (i32, i32, i32) {
    %c0_i32 = arith.constant 0 : i32
    %c0_i32_0 = arith.constant 0 : i32
    %c0_i32_1 = arith.constant 0 : i32
    return %arg0, %c0_i32, %c0_i32_0 : i32, i32, i32
  }
  func.func @transform_2(%arg0: i32) -> (i32, i32, i32) {
    %c0_i32 = arith.constant 0 : i32
    %c0_i32_0 = arith.constant 0 : i32
    %c0_i32_1 = arith.constant 0 : i32
    return %arg0, %c0_i32, %c0_i32_0 : i32, i32, i32
  }
}

</mosaic_0001>

<llo_original>
// kernel: tpu_custom_call.1
$region0: #{tpu_custom_call.1}
  #allocation0 [shape = 'u32[]', space=smem, size = 0x4, offset = 0x4, fixed_abs, tag = 'smem constant byte address 0x4 - core index']
  #allocation1 [shape = 'u32[72,128]{1,0:T(1,128)}', space=vmem, size = 0x9000, scoped, tag = 'internal scratch']
  #allocation2 [shape = 'f32[1,6,1]{2,1,0:T(8,128)}', space=vmem, size = 0x1000, scoped, tag = 'scratch operand']
  %s0 = inlined_call_operand.hbm [shape: f32[3], index: 0, kind: input, shape index: {}]
  %s1 = inlined_call_operand.hbm [shape: f32[2,4,256], index: 1, kind: input, shape index: {}]
  %s2 = inlined_call_operand.hbm [shape: f32[2,4,256], index: 2, kind: output, shape index: {}]
  %s3 = sld [smem:[#allocation0]]
  $region49: #{tpu_custom_call.1} parent=0
    _
  %s5 = ssub.s32 1, %s3
  %s6 = scalar_select 0, %s5, %s3
  $region1: #{tpu_custom_call.1} parent=0
    #allocation3 [shape = 'u8[512]{0}', space=smem, size = 0x200, scoped, tag = 'input window, operand 0, single buffered']
    #allocation4 [shape = 's32[2]{0}', space=sflag, size = 0x8, scoped, tag = 'scoped memory for tpu_custom_call.1']
    #allocation5 [shape = 's32[2]{0}', space=sflag, size = 0x8, scoped, tag = 'scoped memory for tpu_custom_call.1']
    #allocation6 [shape = 's32[2]{0}', space=sflag, size = 0x8, scoped, tag = 'scoped memory for tpu_custom_call.1']
    #allocation7 [shape = 'u8[8192]{0}', space=vmem, size = 0x2000, scoped, tag = 'input window, operand 1']
    #allocation8 [shape = 'u8[8192]{0}', space=vmem, size = 0x2000, scoped, tag = 'output window, operand 0']
    %7 = vsyncpa [#allocation6], 0
    %8 = vsyncpa [#allocation4], 0
    %s9 = scalar_lea.sflag [#allocation4], 1
    %10 = vsyncpa %s9, 0
    %11 = vsyncpa [#allocation5], 0
    %s12 = scalar_lea.sflag [#allocation5], 1
    %13 = vsyncpa %s12, 0
    loop: start=0, step=1, limit=4
    $region2: #{tpu_custom_call.1} parent=1 // loop_pre_header
      _
    $region3: #{tpu_custom_call.1} parent=1 // loop_header
      %s15 = sphi 0, %s19
      %p16 = scmp.ge.s32.totalorder %s15, 4
      %s23 = sphi 0, %s23
      %s25 = sphi 0, %s23
      %s26 = sphi 0, %s25
      %s40 = sphi 0, %s26
      %s46 = sphi 0, %s48
      %s49 = sphi 0, %s46
      %s50 = sphi 0, %s49
      %s66 = sphi 0, %s50
      %s72 = sphi 0, %s74
      %s75 = sphi 0, %s72
      %s76 = sphi 0, %s75
      %s92 = sphi 0, %s76
    $region4: #{tpu_custom_call.1} parent=1 // loop_header_branch
      %18 = sbr.rel (%p16) target = $region8
    $region5: #{tpu_custom_call.1} parent=1 // loop_body
      %s20 = ssub.s32 %s15, 1
      %s21 = ssub.s32 %s15, 2
      %s22 = sadd.s32 %s15, 1
      %s24 = sadd.s32 %s23, 1
      %p27 = scmp.eq.s32.totalorder %s15, 1
      %p28 = scmp.ne.s32.totalorder %s23, %s25
      %p29 = scmp.eq.s32.totalorder %s15, 0
      %p30 = por %p28, %p29
      %p31 = scmp.ne.s32.totalorder %s23, %s25
      %p32 = scmp.eq.s32.totalorder %s20, 1
      %p33 = por %p31, %p32
      %p34 = scmp.ne.s32.totalorder %s25, %s26
      %p35 = scmp.eq.s32.totalorder %s20, 0
      %p36 = por %p34, %p35
      %p37 = scmp.ne.s32.totalorder %s25, %s26
      %p38 = scmp.eq.s32.totalorder %s21, 1
      %p39 = por %p37, %p38
      %p41 = scmp.ne.s32.totalorder %s26, %s40
      %p42 = scmp.eq.s32.totalorder %s21, 0
      %p43 = por %p41, %p42
      %s44 = ssub.s32 %s15, %s22
      %p45 = scmp.eq.s32.totalorder %s44, 0
      %s47 = sadd.s32 %s46, 1
      %s48 = scalar_select %p45, %s46, %s47
      %p51 = pneg %p45
      %p52 = scmp.eq.s32.totalorder %s15, 1
      %p53 = por %p51, %p52
      %p54 = scmp.ne.s32.totalorder %s46, %s49
      %p55 = scmp.eq.s32.totalorder %s15, 0
      %p56 = por %p54, %p55
      %p57 = scmp.ne.s32.totalorder %s46, %s49
      %p58 = scmp.eq.s32.totalorder %s20, 1
      %p59 = por %p57, %p58
      %p60 = scmp.ne.s32.totalorder %s49, %s50
      %p61 = scmp.eq.s32.totalorder %s20, 0
      %p62 = por %p60, %p61
      %p63 = scmp.ne.s32.totalorder %s49, %s50
      %p64 = scmp.eq.s32.totalorder %s21, 1
      %p65 = por %p63, %p64
      %p67 = scmp.ne.s32.totalorder %s50, %s66
      %p68 = scmp.eq.s32.totalorder %s21, 0
      %p69 = por %p67, %p68
      %s70 = ssub.s32 %s15, %s22
      %p71 = scmp.eq.s32.totalorder %s70, 0
      %s73 = sadd.s32 %s72, 1
      %s74 = scalar_select %p71, %s72, %s73
      %p77 = pneg %p71
      %p78 = scmp.eq.s32.totalorder %s15, 1
      %p79 = por %p77, %p78
      %p80 = scmp.ne.s32.totalorder %s72, %s75
      %p81 = scmp.eq.s32.totalorder %s15, 0
      %p82 = por %p80, %p81
      %p83 = scmp.ne.s32.totalorder %s72, %s75
      %p84 = scmp.eq.s32.totalorder %s20, 1
      %p85 = por %p83, %p84
      %p86 = scmp.ne.s32.totalorder %s75, %s76
      %p87 = scmp.eq.s32.totalorder %s20, 0
      %p88 = por %p86, %p87
      %p89 = scmp.ne.s32.totalorder %s75, %s76
      %p90 = scmp.eq.s32.totalorder %s21, 1
      %p91 = por %p89, %p90
      %p93 = scmp.ne.s32.totalorder %s76, %s92
      %p94 = scmp.eq.s32.totalorder %s21, 0
      %p95 = por %p93, %p94
      %p96 = scmp.le.s32.totalorder 1, %s15
      %p97 = scmp.lt.s32.totalorder %s15, 3
      %p98 = pnand %p96, %p97
      %p99 = pneg %p98
      // Predicated region
      $region9: #{tpu_custom_call.1} parent=5 // pred_check
        _
      $region10: #{tpu_custom_call.1} parent=5 // pred_check_branch
        %101 = sbr.rel (%p98) target = $region12
      $region11: #{tpu_custom_call.1} parent=5 // pred_region
        %s102 = ssub.s32 %s15, 1
        // Predicated region
        $region13: #{tpu_custom_call.1} parent=11 // pred_check
          %p103 = pneg %p36
        $region14: #{tpu_custom_call.1} parent=11 // pred_check_branch
          %105 = sbr.rel (%p103) target = $region16
        $region15: #{tpu_custom_call.1} parent=11 // pred_region
          %107 = vsyncadd [#allocation6], 0
          %s109 = sshll.u32 %s0, 4
          %s110 = int_to_ptr.hbm [resolvable:$true] %s109
          %112 = dma.hbm_to_smem %s110, 16, [#allocation3], [#allocation6]
        $region16: #{tpu_custom_call.1} parent=11 // pred_fallthru
          _
      $region12: #{tpu_custom_call.1} parent=5 // pred_fallthru
        _
      %p113 = scmp.lt.s32.totalorder %s15, 2
      // Predicated region
      $region17: #{tpu_custom_call.1} parent=5 // pred_check
        %p114 = pneg %p113
      $region18: #{tpu_custom_call.1} parent=5 // pred_check_branch
        %116 = sbr.rel (%p114) target = $region20
      $region19: #{tpu_custom_call.1} parent=5 // pred_region
        // Predicated region
        $region21: #{tpu_custom_call.1} parent=19 // pred_check
          %p117 = pneg %p56
        $region22: #{tpu_custom_call.1} parent=19 // pred_check_branch
          %119 = sbr.rel (%p117) target = $region24
        $region23: #{tpu_custom_call.1} parent=19 // pred_region
          %s120 = sand.u32 %s46, 1
          %s121 = scalar_lea.sflag [#allocation4], %s120
          %s122 = sand.u32 %s46, 1
          %s123 = smul.addr %s122, 8
          %s124 = scalar_lea.vmem [#allocation7], %s123
          %126 = vsyncadd %s121, 0
          %s127 = smul.addr %s15, 2
          %s128 = smul.addr %s127, 4
          %s129 = scalar_lea.hbm %s1, %s128
          %s131 = sshll.u32 %s129, 4
          %s132 = int_to_ptr.hbm [resolvable:$true] %s131
          %s133 = sshll.u32 %s124, 4
          %s134 = int_to_ptr.vmem [resolvable:$true] %s133
          %136 = dma.hbm_to_vmem [thread:$0]  %s132, 128, %s134, %s121
        $region24: #{tpu_custom_call.1} parent=19 // pred_fallthru
          _
      $region20: #{tpu_custom_call.1} parent=5 // pred_fallthru
        _
      %p137 = scmp.le.s32.totalorder 1, %s15
      %p138 = scmp.lt.s32.totalorder %s15, 3
      %p139 = pnand %p137, %p138
      %p140 = pneg %p139
      // Predicated region
      $region25: #{tpu_custom_call.1} parent=5 // pred_check
        _
      $region26: #{tpu_custom_call.1} parent=5 // pred_check_branch
        %142 = sbr.rel (%p139) target = $region28
      $region27: #{tpu_custom_call.1} parent=5 // pred_region
        %s143 = ssub.s32 %s15, 1
        // Predicated region
        $region29: #{tpu_custom_call.1} parent=27 // pred_check
          %p144 = pneg %p36
        $region30: #{tpu_custom_call.1} parent=27 // pred_check_branch
          %146 = sbr.rel (%p144) target = $region32
        $region31: #{tpu_custom_call.1} parent=27 // pred_region
          %148 = dma.done [#allocation6], 16
        $region32: #{tpu_custom_call.1} parent=27 // pred_fallthru
          _
        %s149 = sand.u32 %s49, 1
        %s150 = scalar_lea.sflag [#allocation4], %s149
        %s151 = sand.u32 %s49, 1
        %s152 = smul.addr %s151, 8
        %s153 = scalar_lea.vmem [#allocation7], %s152
        // Predicated region
        $region33: #{tpu_custom_call.1} parent=27 // pred_check
          %p154 = pneg %p62
        $region34: #{tpu_custom_call.1} parent=27 // pred_check_branch
          %156 = sbr.rel (%p154) target = $region36
        $region35: #{tpu_custom_call.1} parent=27 // pred_region
          %158 = dma.done %s150, 128
        $region36: #{tpu_custom_call.1} parent=27 // pred_fallthru
          _
        %159 = sfence
        %p160 = pneg %p36
        %p161 = pneg %p33
        %s162 = sand.u32 %s49, 1
        %s163 = scalar_lea.sflag [#allocation4], %s162
        %s164 = sand.u32 %s49, 1
        %s165 = smul.addr %s164, 8
        %s166 = scalar_lea.vmem [#allocation7], %s165
        %p167 = pneg %p62
        %p168 = pneg %p59
        %p169 = pneg %p88
        %p170 = pneg %p85
        %s171 = sand.u32 %s75, 1
        %s172 = scalar_lea.sflag [#allocation5], %s171
        %s173 = sand.u32 %s75, 1
        %s174 = smul.addr %s173, 8
        %s175 = scalar_lea.vmem [#allocation8], %s174
        %v176 = vld [vmem:[%s153] sm:$0xff]
        %178 = vst [vmem:[#allocation1] ss:$2 sm:$0xff] %v176
        %v179 = vld.sshfl [vmem:[#allocation1] sm:$0xff pattern:$0x75316420]
        %v180 = vld.sshfl [vmem:[#allocation1 + $0x8] sm:$0xff pattern:$0x75316420]
        %vm183 = vcmask 1043456
        %v184 = vsel %vm183, %v179, 0.0
        %v185 = vsel %vm183, %v180, 0.0
        %v186 = vadd.f32 %v184, %v185
        %187 = vadd.xlane.f32.xlu0 %v186
        %v188 = vpop.xlane.xlu0 %187
        %v189 = vmul.f32 %v188, 0.00390625
        %vm190 = vcmask 0
        %191 = vst.msk [vmem:[#allocation2] sm:$0x1] %vm190, 0.0
        %192 = vst.msk [vmem:[#allocation2 + $0x5] sm:$0x1] %vm190, 0.0
        %vm193 = vcmask 3072
        %194 = vst.msk [vmem:[#allocation2 + $0x1] sm:$0xf] %vm193, %v189
        %v195 = vld [vmem:[#allocation2] sm:$0xf]
        %v196 = vld [vmem:[#allocation2 + $0x2] sm:$0xf]
        %s197 = sld [smem:[#allocation3]]
        %v198 = vstv %s197
        %v199 = vmul.f32 %v198, %v195
        %s200 = sld [smem:[#allocation3 + $0x1]]
        %v201 = vstv %s200
        %v202 = vmul.f32 %v201, %v189
        %v203 = vadd.f32 %v199, %v202
        %s204 = sld [smem:[#allocation3 + $0x2]]
        %v205 = vstv %s204
        %v206 = vmul.f32 %v205, %v196
        %v207 = vadd.f32 %v203, %v206
        %v208 = vxor.u32 %v207, 2147483648
        %v209 = vmul.f32 %v208, 1.442695
        %v210 = vpow.pop %v209
        %v211 = vadd.f32 %v210, 1.0
        %v212 = vrcp.pop %v211
        %v213 = vmul.f32 %v211, %v212
        %v214 = vsub.f32 1.0, %v213
        %v215 = vmul.f32 %v212, %v214
        %v216 = vadd.f32 %v212, %v215
        %vm217 = vweird.f32 %v211
        %vm218 = vweird.f32 %v212
        %vm219 = vmor %vm217, %vm218
        %v220 = vsel %vm219, %v212, %v216
        %v221 = vand.u32 2147483647, %v211
        %vm222 = vcmp.eq.f32.partialorder %v221, 8.507059e+37
        %v223 = vand.u32 %v211, 2147483648
        %v224 = vor.u32 1.1754944e-38, %v223
        %v225 = vsel %vm222, %v224, %v220
        %v226 = vmul.f32 1.0, %v225
        %228 = vset.pattern.permute.xlu0 0
        %229 = vperm.xlu0 %228, %v226
        %v230 = vpop.permute.xlu0 %229
        %v232 = vunpack.c.l.s4 839922192
        %v233 = vunpack.c.0.s8 %v232
        %v234 = vperm.slane %v230, %v233
        %v236 = vmul.f32 %v176, %v234
        %237 = vst [vmem:[%s175] sm:$0xff] %v236
        %s238 = sand.u32 %s75, 1
        %s239 = scalar_lea.sflag [#allocation5], %s238
        %s240 = sand.u32 %s75, 1
        %s241 = smul.addr %s240, 8
        %s242 = scalar_lea.vmem [#allocation8], %s241
        // Predicated region
        $region37: #{tpu_custom_call.1} parent=27 // pred_check
          %p243 = pneg %p85
        $region38: #{tpu_custom_call.1} parent=27 // pred_check_branch
          %245 = sbr.rel (%p243) target = $region40
        $region39: #{tpu_custom_call.1} parent=27 // pred_region
          %247 = vsyncadd %s239, 0
          %s248 = smul.addr %s20, 2
          %s249 = smul.addr %s248, 4
          %s250 = scalar_lea.hbm %s2, %s249
          %s252 = sshll.u32 %s242, 4
          %s253 = int_to_ptr.vmem [resolvable:$true] %s252
          %s254 = sshll.u32 %s250, 4
          %s255 = int_to_ptr.hbm [resolvable:$true] %s254
          %257 = dma.vmem_to_hbm [thread:$0]  %s253, 128, %s255, %s239
        $region40: #{tpu_custom_call.1} parent=27 // pred_fallthru
          _
      $region28: #{tpu_custom_call.1} parent=5 // pred_fallthru
        _
      %p258 = scmp.le.s32.totalorder 2, %s15
      // Predicated region
      $region41: #{tpu_custom_call.1} parent=5 // pred_check
        %p259 = pneg %p258
      $region42: #{tpu_custom_call.1} parent=5 // pred_check_branch
        %261 = sbr.rel (%p259) target = $region44
      $region43: #{tpu_custom_call.1} parent=5 // pred_region
        %s262 = ssub.s32 %s15, 2
        // Predicated region
        $region45: #{tpu_custom_call.1} parent=43 // pred_check
          %p263 = pneg %p91
        $region46: #{tpu_custom_call.1} parent=43 // pred_check_branch
          %265 = sbr.rel (%p263) target = $region48
        $region47: #{tpu_custom_call.1} parent=43 // pred_region
          %s266 = sand.u32 %s76, 1
          %s267 = scalar_lea.sflag [#allocation5], %s266
          %s268 = sand.u32 %s76, 1
          %s269 = smul.addr %s268, 8
          %s270 = scalar_lea.vmem [#allocation8], %s269
          %272 = dma.done %s267, 128
        $region48: #{tpu_custom_call.1} parent=43 // pred_fallthru
          _
      $region44: #{tpu_custom_call.1} parent=5 // pred_fallthru
        _
    $region6: #{tpu_custom_call.1} parent=1 // loop_footer
      %s19 = sadd.s32 1, %s15
    $region7: #{tpu_custom_call.1} parent=1 // loop_footer_branch
      %14 = sbr.rel target = $region3
    $region8: #{tpu_custom_call.1} parent=1 // loop_exit
      _
    %273 = vsyncpa [#allocation4], 1
    %s274 = scalar_lea.sflag [#allocation4], 1
    %275 = vsyncpa %s274, 1
    %276 = vsyncpa [#allocation5], 1
    %s277 = scalar_lea.sflag [#allocation5], 1
    %278 = vsyncpa %s277, 1
    %279 = vsyncpa [#allocation6], 1
    %s280 = scalar_lea.sflag [#allocation6], 1
    %281 = vsyncpa %s280, 1

</llo_original>
